<compile_context>
chip_gen: v6e
topology: v6e:2x2x1
jax: 0.10.0
libtpu: 0.0.40
codegen_flags: <defaults>
</compile_context>

<pallas_src>
import math
import jax
import jax.numpy as jnp
from jax.experimental import pallas as pl
from jax.experimental.pallas import tpu as pltpu

SQRT_HALF = math.sqrt(0.5)
LN_EPS = 1e-5
NEG_BIG = -1e30


# ----------------------------- small helpers -----------------------------

def _row_tile(rows, max_tile=512):
    if rows % 8 != 0:
        return rows
    tm = min(rows, max_tile)
    tm -= tm % 8
    while rows % tm != 0:
        tm -= 8
    return tm


def _key_tile(T, max_tile=256):
    tk = min(T, max_tile)
    while tk > 1 and T % tk != 0:
        tk -= 1
    return max(tk, 1)


_VMEM_LIMIT = None


def _vmem_limit_bytes():
    """Generation-aware VMEM limit: ~3/4 of physical, capped at 96 MiB, safe 48 MiB fallback."""
    global _VMEM_LIMIT
    if _VMEM_LIMIT is None:
        limit = 48 * 1024 * 1024
        try:
            cap = getattr(pltpu.get_tpu_info(), "vmem_capacity_bytes", None)
            if cap:
                limit = int(min(cap * 3 // 4, 96 * 1024 * 1024))
        except Exception:
            pass
        _VMEM_LIMIT = limit
    return _VMEM_LIMIT


# ----------------------------- Pallas kernels -----------------------------

def ln_fc1_kernel(x_ref, g_ref, b_ref, w_ref, bw_ref, ln_ref, fc_ref):
    # x: (tm, E) bf16 rows of the embedding; outputs LN(x) (bf16) and fc1(LN(x)) (bf16).
    x = x_ref[...].astype(jnp.float32)
    mu = jnp.mean(x, axis=-1, keepdims=True)
    var = jnp.mean((x - mu) ** 2, axis=-1, keepdims=True)
    ln = (x - mu) * jax.lax.rsqrt(var + LN_EPS) * g_ref[...] + b_ref[...]
    ln_ref[...] = ln.astype(ln_ref.dtype)
    y = jnp.dot(ln.astype(jnp.bfloat16), w_ref[...],
                preferred_element_type=jnp.float32) + bw_ref[...]
    fc_ref[...] = y.astype(fc_ref.dtype)


def _masked_pad_store(x_ref, keep_ref, xp_ref, pad_l, T):
    # Fuse mask + zero-pad: write keep-masked input into the middle of a (Tp, Cin) bf16 scratch.
    xm = x_ref[0].astype(jnp.float32) * keep_ref[0]          # (T, Cin) f32, padded rows zeroed
    xp_ref[...] = jnp.zeros_like(xp_ref)                     # tiny; keeps halo rows zero
    xp_ref[pad_l:pad_l + T, :] = xm.astype(xp_ref.dtype)     # cast to bf16 ONCE
    return xm


def _glu_conv_from_scratch(xp_ref, w_ref, b_ref, T, C):
    # ConvTBC + GLU.  One (Cin, 2C) matmul per tap; K is small & static -> Python loop.
    # TODO(synk): im2col fuse the K taps into a single (T, K*Cin)@(K*Cin, 2C) matmul for better
    #             MXU occupancy on v6e/v7x at production Cin=192/384.
    K = w_ref.shape[0]
    acc = jnp.zeros((T, 2 * C), jnp.float32) + b_ref[...]
    for k in range(K):
        acc = acc + jnp.dot(xp_ref[k:k + T, :], w_ref[k],
                            preferred_element_type=jnp.float32)
    return acc[:, :C] * jax.nn.sigmoid(acc[:, C:])


def _res_norm(x, res, g_ref, beta_ref):
    xr = (x + res.astype(jnp.float32)) * SQRT_HALF
    mu = jnp.mean(xr, axis=-1, keepdims=True)
    var = jnp.mean((xr - mu) ** 2, axis=-1, keepdims=True)
    return (xr - mu) * jax.lax.rsqrt(var + LN_EPS) * g_ref[...] + beta_ref[...]


def conv_layer_kernel(x_ref, keep_ref, res_ref, w_ref, b_ref, g_ref, beta_ref,
                      o_ref, xp_ref):
    # One full conv layer: mask/pad + ConvTBC + GLU + residual-mix + LayerNorm, per batch elem.
    T, C = o_ref.shape[1], o_ref.shape[2]
    K = w_ref.shape[0]
    pad_l = (K - 1) // 2
    _masked_pad_store(x_ref, keep_ref, xp_ref, pad_l, T)
    x = _glu_conv_from_scratch(xp_ref, w_ref, b_ref, T, C)         # (T, C) f32
    o_ref[0] = _res_norm(x, res_ref[0], g_ref, beta_ref).astype(o_ref.dtype)


def conv_attn_layer_kernel(x_ref, keep_ref, res_ref, madd_ref, w_ref, b_ref,
                           wi_ref, bi_ref, wo_ref, bo_ref, g_ref, beta_ref,
                           o_ref, xp_ref):
    # Last conv layer: mask/pad + ConvTBC + GLU + AttentionLayer (flash-tiled softmax) + cat/GLU
    # + residual-mix + LayerNorm.  sqrt(.5) is pre-folded into wi/bi; sqrt(T)*sqrt(.5) into wo;
    # sqrt(.5) into bo.  Key padding mask is additive (precomputed mkey*NEG_BIG).
    T, C = o_ref.shape[1], o_ref.shape[2]
    K = w_ref.shape[0]
    pad_l = (K - 1) // 2
    xm = _masked_pad_store(x_ref, keep_ref, xp_ref, pad_l, T)      # target_embedding, (T, Cin) f32
    x = _glu_conv_from_scratch(xp_ref, w_ref, b_ref, T, C)         # GLU'd conv output (T, C) f32

    x_bf = x.astype(jnp.bfloat16)
    q = (jnp.dot(x_bf, wi_ref[...], preferred_element_type=jnp.float32)
         + bi_ref[...] + xm * SQRT_HALF)                           # (T, C) f32
    q_bf = q.astype(jnp.bfloat16)
    madd = madd_ref[0]                                             # (1, T) additive key mask

    # Flash-style online softmax over key tiles: no (T, T) f32 intermediates at production T.
    TK = _key_tile(T)
    m_i = jnp.full((T, 1), -jnp.inf, jnp.float32)
    l_i = jnp.zeros((T, 1), jnp.float32)
    acc = jnp.zeros((T, C), jnp.float32)
    for kt in range(T // TK):                                      # static Python loop
        xk = x_bf[kt * TK:(kt + 1) * TK, :]                        # (TK, C) keys == values
        s = jax.lax.dot_general(q_bf, xk, (((1,), (1,)), ((), ())),
                                preferred_element_type=jnp.float32)  # (T, TK)
        s = s + madd[:, kt * TK:(kt + 1) * TK]
        m_new = jnp.maximum(m_i, jnp.max(s, axis=-1, keepdims=True))
        a = jnp.exp(m_i - m_new)
        p = jnp.exp(s - m_new)
        l_i = a * l_i + jnp.sum(p, axis=-1, keepdims=True)
        acc = a * acc + jnp.dot(p.astype(jnp.bfloat16), xk,
                                preferred_element_type=jnp.float32)
        m_i = m_new
    attn = acc * pl.reciprocal(l_i, approx=True)                   # softmax(scores) @ x

    xo = (jnp.dot(attn.astype(jnp.bfloat16), wo_ref[...],
                  preferred_element_type=jnp.float32)
          + bo_ref[...] + x * SQRT_HALF)
    x = x * jax.nn.sigmoid(xo)                                     # cat([x, xo]) + GLU
    o_ref[0] = _res_norm(x, res_ref[0], g_ref, beta_ref).astype(o_ref.dtype)


def finalize_kernel(x_ref, w_ref, b_ref, keep_ref, emb_ref, xo_ref, yo_ref):
    # fc2 + masked_fill(pad, 0) + y = (x + input_embedding)*sqrt(.5), row-tiled.
    h = jnp.dot(x_ref[...], w_ref[...], preferred_element_type=jnp.float32) + b_ref[...]
    h = h * keep_ref[...]                                          # complement (keep) mask
    xo_ref[...] = h.astype(xo_ref.dtype)
    yo_ref[...] = ((h + emb_ref[...].astype(jnp.float32)) * SQRT_HALF).astype(yo_ref.dtype)


# ----------------------------- wrappers -----------------------------

def ln_fc1(x, g, b, w, bw):
    B, T, E = x.shape
    Cin = w.shape[1]
    rows = B * T
    tm = _row_tile(rows)
    ln_out, fc_out = pl.pallas_call(
        ln_fc1_kernel,
        out_shape=(jax.ShapeDtypeStruct((rows, E), jnp.bfloat16),
                   jax.ShapeDtypeStruct((rows, Cin), jnp.bfloat16)),
        grid=(rows // tm,),
        in_specs=[
            pl.BlockSpec((tm, E), lambda i: (i, 0)),
            pl.BlockSpec((1, E), lambda i: (0, 0)),
            pl.BlockSpec((1, E), lambda i: (0, 0)),
            pl.BlockSpec((E, Cin), lambda i: (0, 0)),
            pl.BlockSpec((1, Cin), lambda i: (0, 0)),
        ],
        out_specs=(pl.BlockSpec((tm, E), lambda i: (i, 0)),
                   pl.BlockSpec((tm, Cin), lambda i: (i, 0))),
        compiler_params=pltpu.CompilerParams(dimension_semantics=("parallel",)),
    )(x.reshape(rows, E), g.reshape(1, E), b.reshape(1, E),
      w.astype(jnp.bfloat16), bw.reshape(1, Cin))
    return ln_out.reshape(B, T, E), fc_out.reshape(B, T, Cin)


def conv_layer(x, keep_bt1, residual, w, b, ln_g, ln_b, attn=None):
    """One fused conv layer (optionally with the last-layer attention).  x/residual are bf16."""
    B, T, Cin = x.shape
    K, _, C2 = w.shape
    C = C2 // 2
    pad_l, pad_r = (K - 1) // 2, K // 2          # handles both odd and even kernel sizes
    Tp = T + pad_l + pad_r
    w_bf = w.astype(jnp.bfloat16)

    common_in = [pl.BlockSpec((1, T, Cin), lambda i: (i, 0, 0)),   # x (unmasked, unpadded)
                 pl.BlockSpec((1, T, 1), lambda i: (i, 0, 0)),     # keep mask
                 pl.BlockSpec((1, T, C), lambda i: (i, 0, 0))]     # residual
    w_specs = [pl.BlockSpec((K, Cin, C2), lambda i: (0, 0, 0)),
               pl.BlockSpec((1, C2), lambda i: (0, 0))]
    ln_specs = [pl.BlockSpec((1, C), lambda i: (0, 0)),
                pl.BlockSpec((1, C), lambda i: (0, 0))]
    scratch = [pltpu.VMEM((Tp, Cin), jnp.bfloat16)]                # fused mask/pad halo buffer
    # TODO(synk): for production shapes (C=384, long T) add a T tile with halo'd input blocks
    #             (manual DMA / emit_pipeline) so grid depth >> B and blocks fit v7x 64 MiB VMEM.
    cp = pltpu.CompilerParams(dimension_semantics=("parallel",),
                              vmem_limit_bytes=_vmem_limit_bytes())

    if attn is None:
        return pl.pallas_call(
            conv_layer_kernel,
            out_shape=jax.ShapeDtypeStruct((B, T, C), jnp.bfloat16),
            grid=(B,),
            in_specs=common_in + w_specs + ln_specs,
            out_specs=pl.BlockSpec((1, T, C), lambda i: (i, 0, 0)),
            scratch_shapes=scratch,
            compiler_params=cp,
        )(x, keep_bt1, residual, w_bf, b.reshape(1, C2),
          ln_g.reshape(1, C), ln_b.reshape(1, C))

    wi, bi, wo, bo, madd_b1t = attn
    # Fold constant scalings into the attention weights (done once per layer call, tiny).
    wi_s = (wi * SQRT_HALF).astype(jnp.bfloat16)
    bi_s = (bi * SQRT_HALF).reshape(1, C)
    wo_s = (wo * (math.sqrt(T) * SQRT_HALF)).astype(jnp.bfloat16)
    bo_s = (bo * SQRT_HALF).reshape(1, C)
    return pl.pallas_call(
        conv_attn_layer_kernel,
        out_shape=jax.ShapeDtypeStruct((B, T, C), jnp.bfloat16),
        grid=(B,),
        in_specs=(common_in
                  + [pl.BlockSpec((1, 1, T), lambda i: (i, 0, 0))]  # additive key mask
                  + w_specs
                  + [pl.BlockSpec((C, C), lambda i: (0, 0)),
                     pl.BlockSpec((1, C), lambda i: (0, 0)),
                     pl.BlockSpec((C, C), lambda i: (0, 0)),
                     pl.BlockSpec((1, C), lambda i: (0, 0))]
                  + ln_specs),
        out_specs=pl.BlockSpec((1, T, C), lambda i: (i, 0, 0)),
        scratch_shapes=scratch,
        compiler_params=cp,
    )(x, keep_bt1, residual, madd_b1t, w_bf, b.reshape(1, C2),
      wi_s, bi_s, wo_s, bo_s, ln_g.reshape(1, C), ln_b.reshape(1, C))


def finalize(x, w2, b2, keep_bt1, input_embedding):
    B, T, C = x.shape
    E = w2.shape[1]
    rows = B * T
    tm = _row_tile(rows)
    x_out, y_out = pl.pallas_call(
        finalize_kernel,
        out_shape=(jax.ShapeDtypeStruct((rows, E), jnp.float32),
                   jax.ShapeDtypeStruct((rows, E), jnp.float32)),
        grid=(rows // tm,),
        in_specs=[
            pl.BlockSpec((tm, C), lambda i: (i, 0)),
            pl.BlockSpec((C, E), lambda i: (0, 0)),
            pl.BlockSpec((1, E), lambda i: (0, 0)),
            pl.BlockSpec((tm, 1), lambda i: (i, 0)),
            pl.BlockSpec((tm, E), lambda i: (i, 0)),
        ],
        out_specs=(pl.BlockSpec((tm, E), lambda i: (i, 0)),
                   pl.BlockSpec((tm, E), lambda i: (i, 0))),
        compiler_params=pltpu.CompilerParams(dimension_semantics=("parallel",)),
    )(x.reshape(rows, C), w2.astype(jnp.bfloat16), b2.reshape(1, E),
      keep_bt1.reshape(rows, 1), input_embedding.reshape(rows, E))
    return x_out.reshape(B, T, E), y_out.reshape(B, T, E)


# ----------------------------- parameters -----------------------------

def extend_conv_spec(convolutions):
    ext = []
    for spec in convolutions:
        if len(spec) == 3:
            ext.append(spec)
        elif len(spec) == 2:
            ext.append(spec + (1,))
        else:
            raise Exception('invalid conv spec ' + str(spec))
    return tuple(ext)


def init_gptfconv_params(key, embed_dim, convolutions, dropout=0.1):
    convolutions = extend_conv_spec(convolutions)
    in_channels = convolutions[0][0]
    keys = iter(jax.random.split(key, 8 + 4 * len(convolutions)))
    params = {
        'ln_g': jnp.ones((embed_dim,), jnp.float32),
        'ln_b': jnp.zeros((embed_dim,), jnp.float32),
        'fc1_w': math.sqrt((1 - dropout) / embed_dim)
                 * jax.random.normal(next(keys), (embed_dim, in_channels), jnp.float32),
        'fc1_b': jnp.zeros((in_channels,), jnp.float32),
    }
    layers = []
    cin = in_channels
    for i, (cout, k, res) in enumerate(convolutions):
        std_c = math.sqrt(4 * (1.0 - dropout) / (k * cin))
        layer = {
            'res': res,
            'w': std_c * jax.random.normal(next(keys), (k, cin, 2 * cout), jnp.float32),
            'b': jnp.zeros((2 * cout,), jnp.float32),
            'ln_g': jnp.ones((cout,), jnp.float32),
            'ln_b': jnp.zeros((cout,), jnp.float32),
        }
        if i == len(convolutions) - 1:  # AttentionLayer only on the last conv
            std_a = math.sqrt(1.0 / cout)
            layer['attn_wi'] = std_a * jax.random.normal(next(keys), (cout, cout), jnp.float32)
            layer['attn_bi'] = jnp.zeros((cout,), jnp.float32)
            layer['attn_wo'] = std_a * jax.random.normal(next(keys), (cout, cout), jnp.float32)
            layer['attn_bo'] = jnp.zeros((cout,), jnp.float32)
        layers.append(layer)
        cin = cout
    params['convs'] = layers
    params['fc2_w'] = math.sqrt(1.0 / cin) * jax.random.normal(next(keys), (cin, embed_dim), jnp.float32)
    params['fc2_b'] = jnp.zeros((embed_dim,), jnp.float32)
    return params


# ----------------------------- forward passes -----------------------------

def gptfconv_forward(params, embed, tokens):
    """GPTFConvEncoder.forward after the shared-transformer embedding step.
       embed: (B,T,E) bf16, tokens: (B,T) int32.  Dropout is a no-op (inference)."""
    pad = (tokens == 0)                                    # (B,T) bool padding mask
    keep_bt1 = (~pad).astype(jnp.float32)[:, :, None]      # complement mask, computed once
    madd_b1t = pad.astype(jnp.float32)[:, None, :] * NEG_BIG   # additive key mask for attention

    input_embedding, x = ln_fc1(embed, params['ln_g'], params['ln_b'],
                                params['fc1_w'], params['fc1_b'])   # embed_norm + fc1 fused

    residuals = [x]
    n_layers = len(params['convs'])
    for i, layer in enumerate(params['convs']):
        # TODO(synk): res == 0 (no residual) path not implemented; provided specs always use 1.
        residual = residuals[-layer['res']]
        attn = None
        if i == n_layers - 1:
            attn = (layer['attn_wi'], layer['attn_bi'],
                    layer['attn_wo'], layer['attn_bo'], madd_b1t)
        x = conv_layer(x, keep_bt1, residual, layer['w'], layer['b'],
                       layer['ln_g'], layer['ln_b'], attn=attn)
        residuals.append(x)

    x_out, y_out = finalize(x, params['fc2_w'], params['fc2_b'], keep_bt1, input_embedding)
    return {'src_tokens': tokens, 'encoder_out': (x_out, y_out), 'encoder_padding_mask': pad}


def gpt_conut_encoder_forward(src_params, ctx_params, embed_table,
                              src_tokens, src_tokens_with_prev_context, ctx_tokens,
                              src_len):
    """src_len: STATIC Python int = per-row count of src positions (src_tokens == 1).
       Matches the reference's implicit requirement (`.view(bsz, -1)` needs equal counts);
       passing it statically removes the device->host sync of the previous version."""
    # TODO(synk): external share_embed_model.transformer replaced by deterministic embedding lookup.
    emb_bf = embed_table.astype(jnp.bfloat16)              # bf16 activations end-to-end
    full_embed = emb_bf[src_tokens_with_prev_context]      # (B, T_full, E)

    # Device-side gather of the src span (src_tokens == 1); stable argsort preserves row order.
    order = jnp.argsort(jnp.where(src_tokens == 1, 0, 1).astype(jnp.int32), axis=1)
    sel_idx = order[:, :src_len]                            # (B, src_len)
    src_embed = jnp.take_along_axis(full_embed, sel_idx[:, :, None], axis=1)
    src_sel_tokens = jnp.take_along_axis(src_tokens_with_prev_context, sel_idx, axis=1)

    src_out = gptfconv_forward(src_params, src_embed, src_sel_tokens)

    ctx_embed = emb_bf[ctx_tokens]
    ctx_out = gptfconv_forward(ctx_params, ctx_embed, ctx_tokens)

    return {
        'src_tokens': jnp.concatenate([src_out['src_tokens'], ctx_out['src_tokens']], axis=1),
        'encoder_out': (
            jnp.concatenate([src_out['encoder_out'][0], ctx_out['encoder_out'][0]], axis=1),
            jnp.concatenate([src_out['encoder_out'][1], ctx_out['encoder_out'][1]], axis=1),
        ),
        'encoder_padding_mask': jnp.concatenate(
            [src_out['encoder_padding_mask'], ctx_out['encoder_padding_mask']], axis=1),
    }


# ----------------------------- main -----------------------------

if __name__ == "__main__":
    key = jax.random.PRNGKey(0)
    B, T_FULL, T_CTX, E, VOCAB = 2, 16, 8, 32, 50
    SRC_LEN = 8                    # static src-span length (positions with src_tokens == 1)
    SRC_CONVS = ((16, 3),) * 2     # scaled-down ((192,5),)*5
    CTX_CONVS = ((32, 3),) * 3     # scaled-down ((384,5),)*7

    k_emb, k_src, k_ctx, k_tok1, k_tok2 = jax.random.split(key, 5)
    embed_table = 0.02 * jax.random.normal(k_emb, (VOCAB, E), jnp.float32)
    src_params = init_gptfconv_params(k_src, E, SRC_CONVS, dropout=0.1)
    ctx_params = init_gptfconv_params(k_ctx, E, CTX_CONVS, dropout=0.1)

    # tokens (0 = padding)
    src_ctx_tokens = jax.random.randint(k_tok1, (B, T_FULL), 1, VOCAB, dtype=jnp.int32)
    src_ctx_tokens = src_ctx_tokens.at[1, 12].set(0)        # one padded position inside the src span
    # "src_tokens" is the 0/1 indicator of the source span within the full context (8 per row)
    src_tokens = jnp.zeros((B, T_FULL), jnp.int32)
    src_tokens = src_tokens.at[0, 2:10].set(1)
    src_tokens = src_tokens.at[1, 5:13].set(1)
    ctx_tokens = jax.random.randint(k_tok2, (B, T_CTX), 1, VOCAB, dtype=jnp.int32)
    ctx_tokens = ctx_tokens.at[0, 7].set(0).at[1, 6].set(0).at[1, 7].set(0)

    out = gpt_conut_encoder_forward(src_params, ctx_params, embed_table,
                                    src_tokens, src_ctx_tokens, ctx_tokens,
                                    src_len=SRC_LEN)
    jax.block_until_ready(out)

    x_cat, y_cat = out['encoder_out']
    assert out['src_tokens'].shape == (B, SRC_LEN + T_CTX)
    assert x_cat.shape == (B, SRC_LEN + T_CTX, E) and y_cat.shape == (B, SRC_LEN + T_CTX, E)
    assert out['encoder_padding_mask'].shape == (B, SRC_LEN + T_CTX)
    assert bool(jnp.all(jnp.isfinite(x_cat))) and bool(jnp.all(jnp.isfinite(y_cat)))
    print("KERNEL_OK")
</pallas_src>

<mosaic_0001>
module attributes {stable_mosaic.version = 11 : i64} {
  func.func @ln_fc1_kernel(%arg0: i32, %arg1: memref<16x32xbf16, #tpu.memory_space<vmem>>, %arg2: memref<1x32xf32, #tpu.memory_space<vmem>>, %arg3: memref<1x32xf32, #tpu.memory_space<vmem>>, %arg4: memref<32x16xbf16, #tpu.memory_space<vmem>>, %arg5: memref<1x16xf32, #tpu.memory_space<vmem>>, %arg6: memref<16x32xbf16, #tpu.memory_space<vmem>>, %arg7: memref<16x16xbf16, #tpu.memory_space<vmem>>) attributes {dimension_semantics = [#tpu.dimension_semantics<parallel>], iteration_bounds = array<i64: 1>, scalar_prefetch = 0 : i64, scratch_operands = 0 : i64, tpu.core_type = #tpu.core_type<tc>, window_params = [{transform_indices = @transform_0, window_bounds = array<i64: 16, 32>}, {pipeline_mode = #tpu.pipeline_mode<synchronous>, transform_indices = @transform_1, window_bounds = array<i64: 1, 32>}, {pipeline_mode = #tpu.pipeline_mode<synchronous>, transform_indices = @transform_2, window_bounds = array<i64: 1, 32>}, {pipeline_mode = #tpu.pipeline_mode<synchronous>, transform_indices = @transform_3, window_bounds = array<i64: 32, 16>}, {pipeline_mode = #tpu.pipeline_mode<synchronous>, transform_indices = @transform_4, window_bounds = array<i64: 1, 16>}, {transform_indices = @transform_5, window_bounds = array<i64: 16, 32>}, {transform_indices = @transform_6, window_bounds = array<i64: 16, 16>}]} {
    %c0 = arith.constant 0 : index
    %c0_0 = arith.constant 0 : index
    %0 = vector.load %arg1[%c0, %c0_0] : memref<16x32xbf16, #tpu.memory_space<vmem>>, vector<16x32xbf16>
    %1 = arith.extf %0 : vector<16x32xbf16> to vector<16x32xf32>
    %cst = arith.constant dense<0.000000e+00> : vector<16xf32>
    %2 = vector.multi_reduction <add>, %1, %cst [1] : vector<16x32xf32> to vector<16xf32>
    %3 = vector.shape_cast %2 : vector<16xf32> to vector<16x1xf32>
    %cst_1 = arith.constant 3.200000e+01 : f32
    %4 = vector.broadcast %cst_1 : f32 to vector<16x1xf32>
    %5 = arith.divf %3, %4 : vector<16x1xf32>
    %6 = vector.broadcast %5 : vector<16x1xf32> to vector<16x32xf32>
    %7 = arith.subf %1, %6 : vector<16x32xf32>
    %8 = arith.mulf %7, %7 : vector<16x32xf32>
    %cst_2 = arith.constant dense<0.000000e+00> : vector<16xf32>
    %9 = vector.multi_reduction <add>, %8, %cst_2 [1] : vector<16x32xf32> to vector<16xf32>
    %10 = vector.shape_cast %9 : vector<16xf32> to vector<16x1xf32>
    %cst_3 = arith.constant 3.200000e+01 : f32
    %11 = vector.broadcast %cst_3 : f32 to vector<16x1xf32>
    %12 = arith.divf %10, %11 : vector<16x1xf32>
    %13 = vector.broadcast %5 : vector<16x1xf32> to vector<16x32xf32>
    %14 = arith.subf %1, %13 : vector<16x32xf32>
    %cst_4 = arith.constant 9.99999974E-6 : f32
    %15 = vector.broadcast %cst_4 : f32 to vector<16x1xf32>
    %16 = arith.addf %12, %15 : vector<16x1xf32>
    %17 = math.rsqrt %16 : vector<16x1xf32>
    %18 = vector.broadcast %17 : vector<16x1xf32> to vector<16x32xf32>
    %19 = arith.mulf %14, %18 : vector<16x32xf32>
    %c0_5 = arith.constant 0 : index
    %c0_6 = arith.constant 0 : index
    %20 = vector.load %arg2[%c0_5, %c0_6] : memref<1x32xf32, #tpu.memory_space<vmem>>, vector<1x32xf32>
    %21 = vector.broadcast %20 : vector<1x32xf32> to vector<16x32xf32>
    %22 = arith.mulf %19, %21 : vector<16x32xf32>
    %c0_7 = arith.constant 0 : index
    %c0_8 = arith.constant 0 : index
    %23 = vector.load %arg3[%c0_7, %c0_8] : memref<1x32xf32, #tpu.memory_space<vmem>>, vector<1x32xf32>
    %24 = vector.broadcast %23 : vector<1x32xf32> to vector<16x32xf32>
    %25 = arith.addf %22, %24 : vector<16x32xf32>
    %26 = arith.truncf %25 : vector<16x32xf32> to vector<16x32xbf16>
    %c0_9 = arith.constant 0 : index
    %c0_10 = arith.constant 0 : index
    %27 = vector.load %arg6[%c0_9, %c0_10] : memref<16x32xbf16, #tpu.memory_space<vmem>>, vector<16x32xbf16>
    tpu.vector_store %arg6[%c0_9, %c0_10], %26 {strides = array<i32>} : memref<16x32xbf16, #tpu.memory_space<vmem>>, vector<16x32xbf16>,
    %28 = arith.truncf %25 : vector<16x32xf32> to vector<16x32xbf16>
    %c0_11 = arith.constant 0 : index
    %c0_12 = arith.constant 0 : index
    %29 = vector.load %arg4[%c0_11, %c0_12] : memref<32x16xbf16, #tpu.memory_space<vmem>>, vector<32x16xbf16>
    %cst_13 = arith.constant dense<0.000000e+00> : vector<16x16xf32>
    %30 = tpu.matmul %28, %29, %cst_13 {dimension_numbers = #tpu.dot_dimension_numbers<[1], [0], [0], [1], [0, 0, 1, 1], [], []>} : vector<16x32xbf16>, vector<32x16xbf16>, vector<16x16xf32> -> vector<16x16xf32>
    %c0_14 = arith.constant 0 : index
    %c0_15 = arith.constant 0 : index
    %31 = vector.load %arg5[%c0_14, %c0_15] : memref<1x16xf32, #tpu.memory_space<vmem>>, vector<1x16xf32>
    %32 = vector.broadcast %31 : vector<1x16xf32> to vector<16x16xf32>
    %33 = arith.addf %30, %32 : vector<16x16xf32>
    %34 = arith.truncf %33 : vector<16x16xf32> to vector<16x16xbf16>
    %c0_16 = arith.constant 0 : index
    %c0_17 = arith.constant 0 : index
    %35 = vector.load %arg7[%c0_16, %c0_17] : memref<16x16xbf16, #tpu.memory_space<vmem>>, vector<16x16xbf16>
    tpu.vector_store %arg7[%c0_16, %c0_17], %34 {strides = array<i32>} : memref<16x16xbf16, #tpu.memory_space<vmem>>, vector<16x16xbf16>,
    return
  }
  func.func @transform_0(%arg0: i32) -> (i32, i32) {
    %c0_i32 = arith.constant 0 : i32
    %c0_i32_0 = arith.constant 0 : i32
    return %arg0, %c0_i32 : i32, i32
  }
  func.func @transform_1(%arg0: i32) -> (i32, i32) {
    %c0_i32 = arith.constant 0 : i32
    %c0_i32_0 = arith.constant 0 : i32
    %c0_i32_1 = arith.constant 0 : i32
    return %c0_i32, %c0_i32_0 : i32, i32
  }
  func.func @transform_2(%arg0: i32) -> (i32, i32) {
    %c0_i32 = arith.constant 0 : i32
    %c0_i32_0 = arith.constant 0 : i32
    %c0_i32_1 = arith.constant 0 : i32
    return %c0_i32, %c0_i32_0 : i32, i32
  }
  func.func @transform_3(%arg0: i32) -> (i32, i32) {
    %c0_i32 = arith.constant 0 : i32
    %c0_i32_0 = arith.constant 0 : i32
    %c0_i32_1 = arith.constant 0 : i32
    return %c0_i32, %c0_i32_0 : i32, i32
  }
  func.func @transform_4(%arg0: i32) -> (i32, i32) {
    %c0_i32 = arith.constant 0 : i32
    %c0_i32_0 = arith.constant 0 : i32
    %c0_i32_1 = arith.constant 0 : i32
    return %c0_i32, %c0_i32_0 : i32, i32
  }
  func.func @transform_5(%arg0: i32) -> (i32, i32) {
    %c0_i32 = arith.constant 0 : i32
    %c0_i32_0 = arith.constant 0 : i32
    return %arg0, %c0_i32 : i32, i32
  }
  func.func @transform_6(%arg0: i32) -> (i32, i32) {
    %c0_i32 = arith.constant 0 : i32
    %c0_i32_0 = arith.constant 0 : i32
    return %arg0, %c0_i32 : i32, i32
  }
}

</mosaic_0001>

<llo_original>
// kernel: tpu_custom_call.1
$region0: #{tpu_custom_call.1}
  #allocation0 [shape = 'u32[]', space=smem, size = 0x4, offset = 0x4, fixed_abs, tag = 'smem constant byte address 0x4 - core index']
  #allocation1 [shape = 'u32[144,128]{1,0:T(1,128)}', space=vmem, size = 0x12000, scoped, tag = 'internal scratch']
  %s0 = inlined_call_operand.vmem [shape: bf16[16,32], index: 0, kind: input, shape index: {}]
  %s1 = inlined_call_operand.vmem [shape: f32[1,32], index: 1, kind: input, shape index: {}]
  %s2 = inlined_call_operand.vmem [shape: f32[1,32], index: 2, kind: input, shape index: {}]
  %s3 = inlined_call_operand.vmem [shape: bf16[32,16], index: 3, kind: input, shape index: {}]
  %s4 = inlined_call_operand.vmem [shape: f32[1,16], index: 4, kind: input, shape index: {}]
  %s5 = inlined_call_operand.hbm [shape: bf16[16,32], index: 5, kind: output, shape index: {0}]
  %s6 = inlined_call_operand.hbm [shape: bf16[16,16], index: 6, kind: output, shape index: {1}]
  %7 = xla_tuple %s5, %s6
  %s8 = sld [smem:[#allocation0]]
  $region38: #{tpu_custom_call.1} parent=0
    _
  %s10 = ssub.s32 1, %s8
  %s11 = scalar_select 0, %s10, %s8
  $region1: #{tpu_custom_call.1} parent=0
    #allocation2 [shape = 'u8[4096]{0}', space=vmem, size = 0x1000, scoped, tag = 'output window, operand 0, single buffered']
    #allocation3 [shape = 's32[1]{0}', space=sflag, size = 0x4, scoped, tag = 'scoped memory for tpu_custom_call.1']
    #allocation4 [shape = 'u8[4096]{0}', space=vmem, size = 0x1000, scoped, tag = 'output window, operand 1, single buffered']
    #allocation5 [shape = 's32[1]{0}', space=sflag, size = 0x4, scoped, tag = 'scoped memory for tpu_custom_call.1']
    %12 = vsyncpa [#allocation3], 0
    %13 = vsyncpa [#allocation5], 0
    // Predicated region
    $region2: #{tpu_custom_call.1} parent=1 // pred_check
      _
    $region3: #{tpu_custom_call.1} parent=1 // pred_check_branch
      %15 = sbr.rel (0) target = $region5
    $region4: #{tpu_custom_call.1} parent=1 // pred_region
      _
    $region5: #{tpu_custom_call.1} parent=1 // pred_fallthru
      _
    // Predicated region
    $region6: #{tpu_custom_call.1} parent=1 // pred_check
      _
    $region7: #{tpu_custom_call.1} parent=1 // pred_check_branch
      %17 = sbr.rel (0) target = $region9
    $region8: #{tpu_custom_call.1} parent=1 // pred_region
      _
    $region9: #{tpu_custom_call.1} parent=1 // pred_fallthru
      _
    // Predicated region
    $region10: #{tpu_custom_call.1} parent=1 // pred_check
      _
    $region11: #{tpu_custom_call.1} parent=1 // pred_check_branch
      %19 = sbr.rel (0) target = $region13
    $region12: #{tpu_custom_call.1} parent=1 // pred_region
      _
    $region13: #{tpu_custom_call.1} parent=1 // pred_fallthru
      _
    // Predicated region
    $region14: #{tpu_custom_call.1} parent=1 // pred_check
      _
    $region15: #{tpu_custom_call.1} parent=1 // pred_check_branch
      %21 = sbr.rel (0) target = $region17
    $region16: #{tpu_custom_call.1} parent=1 // pred_region
      _
    $region17: #{tpu_custom_call.1} parent=1 // pred_fallthru
      _
    // Predicated region
    $region18: #{tpu_custom_call.1} parent=1 // pred_check
      _
    $region19: #{tpu_custom_call.1} parent=1 // pred_check_branch
      %23 = sbr.rel (0) target = $region21
    $region20: #{tpu_custom_call.1} parent=1 // pred_region
      _
    $region21: #{tpu_custom_call.1} parent=1 // pred_fallthru
      _
    %v25 = vld [vmem:[%s0] sm:$0xf]
    %v26 = vld [vmem:[%s0 + $0x4] sm:$0xf]
    %v27 = vunpack.c.l.bf16 %v25
    %v28 = vunpack.c.l.bf16 %v26
    %vm29 = vcmask 261120
    %v30 = vsel %vm29, %v27, 0.0
    %31 = vadd.xlane.f32.xlu0 %v30
    %v32 = vpop.xlane.xlu0 %31
    %v33 = vsel %vm29, %v28, 0.0
    %34 = vadd.xlane.f32.xlu0 %v33
    %v35 = vpop.xlane.xlu0 %34
    %v36 = vrcp.pop 32.0
    %v37 = vmul.f32 %v32, %v36
    %v38 = vmul.f32 %v35, %v36
    %v39 = vsub.f32 %v27, %v37
    %v40 = vsub.f32 %v28, %v38
    %v41 = vmul.f32 %v39, %v39
    %v42 = vmul.f32 %v40, %v40
    %v43 = vsel %vm29, %v41, 0.0
    %44 = vadd.xlane.f32.xlu0 %v43
    %v45 = vpop.xlane.xlu0 %44
    %v46 = vsel %vm29, %v42, 0.0
    %47 = vadd.xlane.f32.xlu0 %v46
    %v48 = vpop.xlane.xlu0 %47
    %v49 = vmul.f32 %v45, %v36
    %v50 = vmul.f32 %v48, %v36
    %v51 = vadd.f32 %v49, 1e-05
    %v52 = vadd.f32 %v50, 1e-05
    %v53 = vrsqrt.pop %v51
    %v54 = vrsqrt.pop %v52
    %v55 = vmul.f32 %v39, %v53
    %v56 = vmul.f32 %v40, %v54
    %v57 = vld [vmem:[%s1] sm:$0x1]
    %v59 = vlaneseq
    %v60 = vshrl.u32 %v59, 7
    %v61 = vsub.s32 0, %v60
    %v62 = vrot.slane %v57, %v61
    %v64 = vmul.f32 %v55, %v62
    %v65 = vmul.f32 %v56, %v62
    %v66 = vld [vmem:[%s2] sm:$0x1]
    %v68 = vlaneseq
    %v69 = vshrl.u32 %v68, 7
    %v70 = vsub.s32 0, %v69
    %v71 = vrot.slane %v66, %v70
    %v73 = vadd.f32 %v64, %v71
    %v74 = vadd.f32 %v65, %v71
    %v75 = vpack.c.bf16 %v74, %v73
    %v77 = vunpack.c.l.b16 %v75
    %v78 = vunpack.c.h.b16 %v75
    %v79 = vpack.c.b16 %v77, %v77
    %v80 = vpack.c.b16 %v78, %v78
    %vm83 = vcmask 257024
    %84 = vst.msk [vmem:[#allocation2] sm:$0xf] %vm83, %v79
    %85 = vst.msk [vmem:[#allocation2 + $0x4] sm:$0xf] %vm83, %v80
    %v86 = vld [vmem:[%s3] sm:$0xf]
    %v87 = vld [vmem:[%s3 + $0x4] sm:$0xf]
    %v88 = vld [vmem:[%s3 + $0x8] sm:$0xf]
    %v89 = vld [vmem:[%s3 + $0xc] sm:$0xf]
    %v90 = vld [vmem:[%s4] sm:$0x1]
    %v92 = vlaneseq
    %v93 = vshrl.u32 %v92, 7
    %v94 = vsub.s32 0, %v93
    %v95 = vrot.slane %v90, %v94
    %v101 = vunpack.c.l.b16 %v86
    %v102 = vunpack.c.l.b16 %v87
    %v103 = vunpack.c.l.b16 %v88
    %v104 = vunpack.c.l.b16 %v89
    %v105 = vpack.c.b16 %v102, %v101
    %v106 = vpack.c.b16 %v104, %v103
    %v110 = vsel %vm29, %v75, 0
    %112 = vmatprep.subr.bf16.mxu0 0
    %113 = vmatpush1.bf16.msra.mxu0 0
    %114 = vmatprep.subr.bf16.mxu0 0
    %115 = vmatpush1.bf16.msra.mxu0 0
    %116 = vmatprep.subr.bf16.mxu0 0
    %117 = vmatpush1.bf16.msra.mxu0 0
    %118 = vmatprep.subr.bf16.mxu0 0
    %119 = vmatpush1.bf16.msra.mxu0 0
    %120 = vmatprep.subr.bf16.mxu0 0
    %121 = vmatpush1.bf16.msra.mxu0 0
    %122 = vmatprep.subr.bf16.mxu0 0
    %123 = vmatpush1.bf16.msra.mxu0 0
    %124 = vmatprep.subr.bf16.mxu0 0
    %125 = vmatpush1.bf16.msra.mxu0 %v106
    %126 = vmatprep.subr.bf16.mxu0 0
    %127 = vmatpush1.bf16.msra.mxu0 %v105
    %128 = vmatprep.subr.bf16.mxu0 0
    %129 = vmatpush2.bf16.msra.mxu0 0
    %130 = vmatprep.subr.bf16.mxu0 0
    %131 = vmatpush2.bf16.msra.mxu0 0
    %132 = vmatprep.subr.bf16.mxu0 0
    %133 = vmatpush2.bf16.msra.mxu0 0
    %134 = vmatprep.subr.bf16.mxu0 0
    %135 = vmatpush2.bf16.msra.mxu0 0
    %136 = vmatprep.subr.bf16.mxu0 0
    %137 = vmatpush2.bf16.msra.mxu0 0
    %138 = vmatprep.subr.bf16.mxu0 0
    %139 = vmatpush2.bf16.msra.mxu0 0
    %140 = vmatprep.subr.bf16.mxu0 0
    %141 = vmatpush2.bf16.msra.mxu0 0
    %142 = vmatprep.subr.bf16.mxu0 0
    %143 = vmatpush2.bf16.msra.mxu0 0
    %144 = vmatprep.mubr.bf16.mxu0 0
    %145 = vmatmul.mubr.bf16.gmra.mxu0 %v110
    %v146 = vpop.f32.mrf.mxu0
    %v147 = vadd.f32 %v95, %v146
    %v148 = vpop.f32.mrf.mxu0
    %v149 = vpop.f32.mrf.mxu0
    %v150 = vadd.f32 %v95, %v149
    %v151 = vpop.f32.mrf.mxu0
    %152 = vdwg.mxu0
    %v153 = vpack.c.bf16 %v150, %v147
    %v155 = vunpack.c.l.b16 %v153
    %v156 = vunpack.c.h.b16 %v153
    %v157 = vpack.c.b16 %v155, %v155
    %v158 = vpack.c.b16 %v156, %v156
    %vm161 = vcmask 125952
    %162 = vst.msk [vmem:[#allocation4] sm:$0xf] %vm161, %v157
    %163 = vst.msk [vmem:[#allocation4 + $0x4] sm:$0xf] %vm161, %v158
    // Predicated region
    $region22: #{tpu_custom_call.1} parent=1 // pred_check
      _
    $region23: #{tpu_custom_call.1} parent=1 // pred_check_branch
      %165 = sbr.rel (0) target = $region25
    $region24: #{tpu_custom_call.1} parent=1 // pred_region
      %s167 = ssub.s32 128, 128
      %168 = vsyncadd [#allocation3], %s167
      %s169 = sshll.u32 [#allocation2], 4
      %s170 = int_to_ptr.vmem [resolvable:$true] %s169
      %175 = dma.vmem_to_hbm [thread:$0]  %s170, 128, %s5, [#allocation3], 64, 64, 4
    $region25: #{tpu_custom_call.1} parent=1 // pred_fallthru
      _
    // Predicated region
    $region26: #{tpu_custom_call.1} parent=1 // pred_check
      _
    $region27: #{tpu_custom_call.1} parent=1 // pred_check_branch
      %177 = sbr.rel (0) target = $region29
    $region28: #{tpu_custom_call.1} parent=1 // pred_region
      %s179 = ssub.s32 128, 128
      %180 = vsyncadd [#allocation5], %s179
      %s181 = sshll.u32 [#allocation4], 4
      %s182 = int_to_ptr.vmem [resolvable:$true] %s181
      %187 = dma.vmem_to_hbm [thread:$0]  %s182, 128, %s6, [#allocation5], 64, 64, 4
    $region29: #{tpu_custom_call.1} parent=1 // pred_fallthru
      _
    // Predicated region
    $region30: #{tpu_custom_call.1} parent=1 // pred_check
      _
    $region31: #{tpu_custom_call.1} parent=1 // pred_check_branch
      %189 = sbr.rel (0) target = $region33
    $region32: #{tpu_custom_call.1} parent=1 // pred_region
      %190 = dma.done [#allocation3], 128
    $region33: #{tpu_custom_call.1} parent=1 // pred_fallthru
      _
    // Predicated region
    $region34: #{tpu_custom_call.1} parent=1 // pred_check
      _
    $region35: #{tpu_custom_call.1} parent=1 // pred_check_branch
      %192 = sbr.rel (0) target = $region37
    $region36: #{tpu_custom_call.1} parent=1 // pred_region
      %193 = dma.done [#allocation5], 128
    $region37: #{tpu_custom_call.1} parent=1 // pred_fallthru
      _
    %194 = vsyncpa [#allocation3], 1
    %195 = vsyncpa [#allocation5], 1

</llo_original>
